<compile_context>
chip_gen: v5e
topology: v5e:2x2
jax: 0.10.0
libtpu: 0.0.40
codegen_flags: <defaults>
</compile_context>

<pallas_src>
import jax
import jax.numpy as jnp
import numpy as np
from jax.experimental import pallas as pl
from jax.experimental.pallas import tpu as pltpu

EPS = 1e-5
# bf16 operands = native MXU format on v5e/v6e/v7x; accumulation stays f32.
MATMUL_DTYPE = jnp.bfloat16
LANE = 128


def _round_up(x, m):
    return (x + m - 1) // m * m


def _make_decoder_kernel(layer_cfgs, batch, l0, pitch):
    """Fused decoder kernel.

    layer_cfgs: tuple of (c_out, ksize, apply_bn_relu) -- static Python values.
    Internal activation layout: (C, batch*pitch). Each batch segment holds its
    L valid samples followed by zeros; pitch >= every layer's L_out guarantees
    the im2col shifts never leak data across batch segments.
    """
    n_layers = len(layer_cfgs)
    bp = batch * pitch

    def kernel(*refs):
        x_ref = refs[0]
        o_ref = refs[-1]
        prm = refs[1:-1]  # per layer: (w_flat_ref, bgb_ref)

        # (B, C0, L0) -> (C0, B*pitch): fold batch onto lanes, zero tails.
        x = x_ref[...].astype(jnp.float32)
        h = jnp.concatenate(
            [jnp.pad(x[b], ((0, 0), (0, pitch - l0))) for b in range(batch)],
            axis=1)

        l_in = l0
        for idx, (c_out, ksize, apply_bn_relu) in enumerate(layer_cfgs):
            w_flat = prm[2 * idx][...]                        # (C_out, K*C_in), bf16
            bgb = prm[2 * idx + 1][...].astype(jnp.float32)   # (C_out, 3) = [bias, gamma, beta]
            l_out = l_in + ksize - 1

            # im2col with the transposed-conv zero padding folded in:
            #   tap_k[i, c] = h[i, c-k]  (zero-filled for c < k)
            # so  x_col[k*C_in + i, b*pitch + t] = h_prev[b, i, t-k].
            # (The zero tails of each segment make the shift leak-free; at
            #  production sizes this shift could be a pltpu.roll / XLU op.)
            h_mm = h.astype(MATMUL_DTYPE)
            taps = [h_mm] + [
                jnp.pad(h_mm[:, :bp - k], ((0, 0), (k, 0)))
                for k in range(1, ksize)
            ]
            x_col = jnp.concatenate(taps, axis=0)             # (K*C_in, B*pitch)

            # ConvTranspose1d for the whole batch as ONE MXU matmul; the K tap
            # contributions are summed inside the contraction (depth K*C_in).
            y = jnp.dot(w_flat, x_col,
                        preferred_element_type=jnp.float32)   # (C_out, B*pitch) f32

            if apply_bn_relu:
                # Training-mode BatchNorm1d (biased variance) + ReLU, all f32.
                # Conv bias cancels exactly under BN, so it is not added here.
                # Single pass: sum / sum-of-squares (zero tails contribute 0),
                # then one fused scale*y + shift sweep.
                n_valid = float(batch * l_out)
                s1 = jnp.sum(y, axis=1, keepdims=True)
                s2 = jnp.sum(y * y, axis=1, keepdims=True)
                mean = s1 / n_valid
                var = s2 / n_valid - mean * mean
                scale = bgb[:, 1:2] * jax.lax.rsqrt(var + EPS)
                shift = bgb[:, 2:3] - mean * scale
                y = jnp.maximum(y * scale + shift, 0.0)
            else:
                y = y + bgb[:, 0:1]                           # conv bias (no BN layer)

            if idx < n_layers - 1:
                # Re-zero the per-batch lane tails (shift/ReLU/bias made them
                # nonzero) so the next layer's im2col and BN stats stay exact.
                seg = (jax.lax.broadcasted_iota(jnp.int32, (1, pitch), 1)
                       < l_out).astype(jnp.float32)
                mask = jnp.concatenate([seg] * batch, axis=1)  # (1, B*pitch)
                y = y * mask

            h = y
            l_in = l_out

        # (C_last, B*pitch) -> (B, C_last, pitch): 128-aligned segment views,
        # lane-dense store. Wrapper crops pitch -> true L_out.
        o_ref[...] = jnp.stack(
            [h[:, b * pitch:(b + 1) * pitch] for b in range(batch)],
            axis=0).astype(o_ref.dtype)

    return kernel


def prepare_decoder_params(params):
    """One-time re-layout of PyTorch-style params for the kernel (hoisted out
    of the forward pass so transposes/packing are not re-run every call)."""
    flat, cfgs = [], []
    for p in params:
        w = p["w"]                                   # ConvTranspose1d: (C_in, C_out, K)
        c_in, c_out, k = (int(d) for d in w.shape)
        # W_flat[o, k*C_in + i] = w[i, o, k]  -> (C_out, K*C_in), pre-cast to bf16.
        w_flat = jnp.transpose(w, (1, 2, 0)).reshape(c_out, k * c_in).astype(MATMUL_DTYPE)
        # Pack bias / gamma / beta into one (C_out, 3) tile -> one DMA per layer.
        bgb = jnp.stack([p["b"], p["gamma"], p["beta"]], axis=1).astype(jnp.float32)
        flat += [w_flat, bgb]
        cfgs.append((c_out, k))
    return flat, tuple(cfgs)


def decoder_forward(h_ncl, flat_params, layer_cfgs, no_act_last):
    """Full Decoder forward as a single fused Pallas call. h_ncl: (B, C0, L)."""
    batch, _, l0 = h_ncl.shape
    n_layers = len(layer_cfgs)
    l_final = l0 + sum(k - 1 for _, k in layer_cfgs)
    c_final = layer_cfgs[-1][0]
    pitch = _round_up(l_final, LANE)                 # per-batch lane pitch (128-aligned)

    kcfgs = tuple(
        (c_out, k, not (no_act_last and idx == n_layers - 1))
        for idx, (c_out, k) in enumerate(layer_cfgs))
    kernel = _make_decoder_kernel(kcfgs, batch, l0, pitch)

    vmem = pl.BlockSpec(memory_space=pltpu.MemorySpace.VMEM)
    out_padded = pl.pallas_call(
        kernel,
        out_shape=jax.ShapeDtypeStruct((batch, c_final, pitch), jnp.float32),
        in_specs=[vmem] * (1 + len(flat_params)),
        out_specs=vmem,
    )(h_ncl, *flat_params)
    # Kernel stores lane-dense; crop the 128-aligned pitch back to the true L.
    return out_padded[:, :, :l_final]


def init_decoder_params(key, nb_inputs, channel_list, ksize_list):
    """Deterministic parameter init mirroring the PyTorch __init__ shapes."""
    chans = list(channel_list) + [nb_inputs]
    ks_rev = ksize_list[::-1]
    params = []
    for c_in, c_out, k in zip(chans[:-1], chans[1:], ks_rev):
        key, kw, kb = jax.random.split(key, 3)
        # nn.ConvTranspose1d weight shape: (in_channels, out_channels, kernel_size)
        w = 0.1 * jax.random.normal(kw, (c_in, c_out, k), jnp.float32)
        b = 0.05 * jax.random.normal(kb, (c_out,), jnp.float32)
        gamma = jnp.ones((c_out,), jnp.float32)      # BatchNorm1d default weight
        beta = jnp.zeros((c_out,), jnp.float32)      # BatchNorm1d default bias
        params.append({"w": w, "b": b, "gamma": gamma, "beta": beta})
    return params


def _ref_forward(h, params, no_act_last):
    """Pure-jnp f32 reference with PyTorch-identical math, (B, C, L) layout."""
    nb_layers = len(params)
    for idx, p in enumerate(params):
        w, b = p["w"], p["b"]
        bsz, c_in, l_in = h.shape
        k = w.shape[2]
        l_out = l_in + k - 1
        acc = jnp.zeros((bsz, w.shape[1], l_out), jnp.float32)
        for kk in range(k):
            acc = acc.at[:, :, kk:kk + l_in].add(
                jnp.einsum("io,bil->bol", w[:, :, kk], h))
        acc = acc + b[None, :, None]
        if not (no_act_last and idx == nb_layers - 1):
            mean = acc.mean(axis=(0, 2), keepdims=True)
            var = ((acc - mean) ** 2).mean(axis=(0, 2), keepdims=True)
            acc = (acc - mean) / jnp.sqrt(var + EPS)
            acc = acc * p["gamma"][None, :, None] + p["beta"][None, :, None]
            acc = jnp.maximum(acc, 0.0)
        h = acc
    return h


if __name__ == "__main__":
    # Module config (small, consistent with the PyTorch constructor):
    nb_inputs = 4
    channel_list = [16, 8]        # decoder input has channel_list[0] channels
    ksize_list = [3, 5]           # used reversed -> layer kernels are [5, 3]
    no_act_last = True            # last layer: no BN / ReLU
    batch, seq = 2, 8

    key = jax.random.PRNGKey(0)
    key, kx = jax.random.split(key)
    h = jax.random.normal(kx, (batch, channel_list[0], seq), jnp.float32)

    params = init_decoder_params(key, nb_inputs, channel_list, ksize_list)
    flat_params, layer_cfgs = prepare_decoder_params(params)   # one-time prep

    fwd = jax.jit(decoder_forward, static_argnums=(2, 3))
    out = jax.block_until_ready(fwd(h, flat_params, layer_cfgs, no_act_last))

    # Shape check: L grows by (k-1) per layer: 8 -> 12 -> 14, channels 16->8->4.
    assert out.shape == (batch, nb_inputs, seq + sum(k - 1 for k in ksize_list)), out.shape

    ref = jax.block_until_ready(_ref_forward(h, params, no_act_last))
    # bf16 MXU operands (f32 accumulation) -> slightly loosened tolerance.
    np.testing.assert_allclose(np.asarray(out), np.asarray(ref), rtol=5e-2, atol=5e-2)

    print("KERNEL_OK")
</pallas_src>

<mosaic_0001>
module attributes {stable_mosaic.version = 11 : i64} {
  func.func @kernel(%arg0: memref<2x16x8xf32, #tpu.memory_space<vmem>>, %arg1: memref<8x80xbf16, #tpu.memory_space<vmem>>, %arg2: memref<8x3xf32, #tpu.memory_space<vmem>>, %arg3: memref<4x24xbf16, #tpu.memory_space<vmem>>, %arg4: memref<4x3xf32, #tpu.memory_space<vmem>>, %arg5: memref<2x4x128xf32, #tpu.memory_space<vmem>>) attributes {dimension_semantics = [], scalar_prefetch = 0 : i64, scratch_operands = 0 : i64, tpu.core_type = #tpu.core_type<tc>} {
    %c0 = arith.constant 0 : index
    %c0_0 = arith.constant 0 : index
    %c0_1 = arith.constant 0 : index
    %0 = vector.load %arg0[%c0, %c0_0, %c0_1] : memref<2x16x8xf32, #tpu.memory_space<vmem>>, vector<2x16x8xf32>
    %1 = vector.extract_strided_slice %0 {offsets = [0, 0, 0], sizes = [1, 16, 8], strides = [1, 1, 1]} : vector<2x16x8xf32> to vector<1x16x8xf32>
    %2 = vector.shape_cast %1 : vector<1x16x8xf32> to vector<16x8xf32>
    %c0_i32 = arith.constant 0 : i32
    %3 = arith.sitofp %c0_i32 : i32 to f32
    %4 = vector.broadcast %3 : f32 to vector<16x120xf32>
    %5 = tpu.concatenate %2, %4 in 1 : vector<16x8xf32>, vector<16x120xf32> -> vector<16x128xf32>
    %6 = vector.extract_strided_slice %0 {offsets = [1, 0, 0], sizes = [1, 16, 8], strides = [1, 1, 1]} : vector<2x16x8xf32> to vector<1x16x8xf32>
    %7 = vector.shape_cast %6 : vector<1x16x8xf32> to vector<16x8xf32>
    %c0_i32_2 = arith.constant 0 : i32
    %8 = arith.sitofp %c0_i32_2 : i32 to f32
    %9 = vector.broadcast %8 : f32 to vector<16x120xf32>
    %10 = tpu.concatenate %7, %9 in 1 : vector<16x8xf32>, vector<16x120xf32> -> vector<16x128xf32>
    %11 = tpu.concatenate %5, %10 in 1 : vector<16x128xf32>, vector<16x128xf32> -> vector<16x256xf32>
    %c0_3 = arith.constant 0 : index
    %c0_4 = arith.constant 0 : index
    %12 = vector.load %arg1[%c0_3, %c0_4] : memref<8x80xbf16, #tpu.memory_space<vmem>>, vector<8x80xbf16>
    %c0_5 = arith.constant 0 : index
    %c0_6 = arith.constant 0 : index
    %13 = vector.load %arg2[%c0_5, %c0_6] : memref<8x3xf32, #tpu.memory_space<vmem>>, vector<8x3xf32>
    %14 = arith.truncf %11 : vector<16x256xf32> to vector<16x256xbf16>
    %15 = vector.extract_strided_slice %14 {offsets = [0, 0], sizes = [16, 255], strides = [1, 1]} : vector<16x256xbf16> to vector<16x255xbf16>
    %c0_i32_7 = arith.constant 0 : i32
    %16 = arith.sitofp %c0_i32_7 : i32 to bf16
    %17 = vector.broadcast %16 : bf16 to vector<16x1xbf16>
    %18 = tpu.concatenate %17, %15 in 1 : vector<16x1xbf16>, vector<16x255xbf16> -> vector<16x256xbf16>
    %19 = vector.extract_strided_slice %14 {offsets = [0, 0], sizes = [16, 254], strides = [1, 1]} : vector<16x256xbf16> to vector<16x254xbf16>
    %c0_i32_8 = arith.constant 0 : i32
    %20 = arith.sitofp %c0_i32_8 : i32 to bf16
    %21 = vector.broadcast %20 : bf16 to vector<16x2xbf16>
    %22 = tpu.concatenate %21, %19 in 1 : vector<16x2xbf16>, vector<16x254xbf16> -> vector<16x256xbf16>
    %23 = vector.extract_strided_slice %14 {offsets = [0, 0], sizes = [16, 253], strides = [1, 1]} : vector<16x256xbf16> to vector<16x253xbf16>
    %c0_i32_9 = arith.constant 0 : i32
    %24 = arith.sitofp %c0_i32_9 : i32 to bf16
    %25 = vector.broadcast %24 : bf16 to vector<16x3xbf16>
    %26 = tpu.concatenate %25, %23 in 1 : vector<16x3xbf16>, vector<16x253xbf16> -> vector<16x256xbf16>
    %27 = vector.extract_strided_slice %14 {offsets = [0, 0], sizes = [16, 252], strides = [1, 1]} : vector<16x256xbf16> to vector<16x252xbf16>
    %c0_i32_10 = arith.constant 0 : i32
    %28 = arith.sitofp %c0_i32_10 : i32 to bf16
    %29 = vector.broadcast %28 : bf16 to vector<16x4xbf16>
    %30 = tpu.concatenate %29, %27 in 1 : vector<16x4xbf16>, vector<16x252xbf16> -> vector<16x256xbf16>
    %31 = tpu.concatenate %14, %18, %22, %26, %30 in 0 : vector<16x256xbf16>, vector<16x256xbf16>, vector<16x256xbf16>, vector<16x256xbf16>, vector<16x256xbf16> -> vector<80x256xbf16>
    %cst = arith.constant dense<0.000000e+00> : vector<8x256xf32>
    %32 = tpu.matmul %12, %31, %cst {dimension_numbers = #tpu.dot_dimension_numbers<[1], [0], [0], [1], [0, 0, 1, 1], [], []>} : vector<8x80xbf16>, vector<80x256xbf16>, vector<8x256xf32> -> vector<8x256xf32>
    %cst_11 = arith.constant dense<0.000000e+00> : vector<8xf32>
    %33 = vector.multi_reduction <add>, %32, %cst_11 [1] : vector<8x256xf32> to vector<8xf32>
    %34 = vector.shape_cast %33 : vector<8xf32> to vector<8x1xf32>
    %35 = arith.mulf %32, %32 : vector<8x256xf32>
    %cst_12 = arith.constant dense<0.000000e+00> : vector<8xf32>
    %36 = vector.multi_reduction <add>, %35, %cst_12 [1] : vector<8x256xf32> to vector<8xf32>
    %37 = vector.shape_cast %36 : vector<8xf32> to vector<8x1xf32>
    %cst_13 = arith.constant 2.400000e+01 : f32
    %38 = vector.broadcast %cst_13 : f32 to vector<8x1xf32>
    %39 = arith.divf %34, %38 : vector<8x1xf32>
    %cst_14 = arith.constant 2.400000e+01 : f32
    %40 = vector.broadcast %cst_14 : f32 to vector<8x1xf32>
    %41 = arith.divf %37, %40 : vector<8x1xf32>
    %42 = arith.mulf %39, %39 : vector<8x1xf32>
    %43 = arith.subf %41, %42 : vector<8x1xf32>
    %44 = vector.extract_strided_slice %13 {offsets = [0, 1], sizes = [8, 1], strides = [1, 1]} : vector<8x3xf32> to vector<8x1xf32>
    %cst_15 = arith.constant 9.99999974E-6 : f32
    %45 = vector.broadcast %cst_15 : f32 to vector<8x1xf32>
    %46 = arith.addf %43, %45 : vector<8x1xf32>
    %47 = math.rsqrt %46 : vector<8x1xf32>
    %48 = arith.mulf %44, %47 : vector<8x1xf32>
    %49 = vector.extract_strided_slice %13 {offsets = [0, 2], sizes = [8, 1], strides = [1, 1]} : vector<8x3xf32> to vector<8x1xf32>
    %50 = arith.mulf %39, %48 : vector<8x1xf32>
    %51 = arith.subf %49, %50 : vector<8x1xf32>
    %52 = vector.broadcast %48 : vector<8x1xf32> to vector<8x256xf32>
    %53 = arith.mulf %32, %52 : vector<8x256xf32>
    %54 = vector.broadcast %51 : vector<8x1xf32> to vector<8x256xf32>
    %55 = arith.addf %53, %54 : vector<8x256xf32>
    %cst_16 = arith.constant 0.000000e+00 : f32
    %56 = vector.broadcast %cst_16 : f32 to vector<8x256xf32>
    %57 = arith.maximumf %55, %56 : vector<8x256xf32>
    %58 = tpu.iota {dimensions = array<i32: 1>} : vector<1x128xi32>
    %c12_i32 = arith.constant 12 : i32
    %59 = vector.broadcast %c12_i32 : i32 to vector<1x128xi32>
    %60 = arith.cmpi slt, %58, %59 : vector<1x128xi32>
    %61 = arith.extui %60 : vector<1x128xi1> to vector<1x128xi32>
    %62 = arith.sitofp %61 : vector<1x128xi32> to vector<1x128xf32>
    %63 = tpu.concatenate %62, %62 in 1 : vector<1x128xf32>, vector<1x128xf32> -> vector<1x256xf32>
    %64 = vector.broadcast %63 : vector<1x256xf32> to vector<8x256xf32>
    %65 = arith.mulf %57, %64 : vector<8x256xf32>
    %c0_17 = arith.constant 0 : index
    %c0_18 = arith.constant 0 : index
    %66 = vector.load %arg3[%c0_17, %c0_18] : memref<4x24xbf16, #tpu.memory_space<vmem>>, vector<4x24xbf16>
    %c0_19 = arith.constant 0 : index
    %c0_20 = arith.constant 0 : index
    %67 = vector.load %arg4[%c0_19, %c0_20] : memref<4x3xf32, #tpu.memory_space<vmem>>, vector<4x3xf32>
    %68 = arith.truncf %65 : vector<8x256xf32> to vector<8x256xbf16>
    %69 = vector.extract_strided_slice %68 {offsets = [0, 0], sizes = [8, 255], strides = [1, 1]} : vector<8x256xbf16> to vector<8x255xbf16>
    %c0_i32_21 = arith.constant 0 : i32
    %70 = arith.sitofp %c0_i32_21 : i32 to bf16
    %71 = vector.broadcast %70 : bf16 to vector<8x1xbf16>
    %72 = tpu.concatenate %71, %69 in 1 : vector<8x1xbf16>, vector<8x255xbf16> -> vector<8x256xbf16>
    %73 = vector.extract_strided_slice %68 {offsets = [0, 0], sizes = [8, 254], strides = [1, 1]} : vector<8x256xbf16> to vector<8x254xbf16>
    %c0_i32_22 = arith.constant 0 : i32
    %74 = arith.sitofp %c0_i32_22 : i32 to bf16
    %75 = vector.broadcast %74 : bf16 to vector<8x2xbf16>
    %76 = tpu.concatenate %75, %73 in 1 : vector<8x2xbf16>, vector<8x254xbf16> -> vector<8x256xbf16>
    %77 = tpu.concatenate %68, %72, %76 in 0 : vector<8x256xbf16>, vector<8x256xbf16>, vector<8x256xbf16> -> vector<24x256xbf16>
    %cst_23 = arith.constant dense<0.000000e+00> : vector<4x256xf32>
    %78 = tpu.matmul %66, %77, %cst_23 {dimension_numbers = #tpu.dot_dimension_numbers<[1], [0], [0], [1], [0, 0, 1, 1], [], []>} : vector<4x24xbf16>, vector<24x256xbf16>, vector<4x256xf32> -> vector<4x256xf32>
    %79 = vector.extract_strided_slice %67 {offsets = [0, 0], sizes = [4, 1], strides = [1, 1]} : vector<4x3xf32> to vector<4x1xf32>
    %80 = vector.broadcast %79 : vector<4x1xf32> to vector<4x256xf32>
    %81 = arith.addf %78, %80 : vector<4x256xf32>
    %82 = vector.extract_strided_slice %81 {offsets = [0, 0], sizes = [4, 128], strides = [1, 1]} : vector<4x256xf32> to vector<4x128xf32>
    %83 = vector.extract_strided_slice %81 {offsets = [0, 128], sizes = [4, 128], strides = [1, 1]} : vector<4x256xf32> to vector<4x128xf32>
    %84 = vector.shape_cast %82 : vector<4x128xf32> to vector<1x4x128xf32>
    %85 = vector.shape_cast %83 : vector<4x128xf32> to vector<1x4x128xf32>
    %86 = tpu.concatenate %84, %85 in 0 : vector<1x4x128xf32>, vector<1x4x128xf32> -> vector<2x4x128xf32>
    %c0_24 = arith.constant 0 : index
    %c0_25 = arith.constant 0 : index
    %c0_26 = arith.constant 0 : index
    %87 = vector.load %arg5[%c0_24, %c0_25, %c0_26] : memref<2x4x128xf32, #tpu.memory_space<vmem>>, vector<2x4x128xf32>
    tpu.vector_store %arg5[%c0_24, %c0_25, %c0_26], %86 {strides = array<i32>} : memref<2x4x128xf32, #tpu.memory_space<vmem>>, vector<2x4x128xf32>,
    return
  }
}

</mosaic_0001>

<llo_original>
// kernel: decoder_forward.1
$region0: #{decoder_forward.1}
  #allocation0 [shape = 'u32[]', space=smem, size = 0x4, offset = 0x4, fixed_abs, tag = 'smem constant byte address 0x4 - core index']
  #allocation1 [shape = 'u32[72,128]{1,0:T(1,128)}', space=vmem, size = 0x9000, scoped, tag = 'internal scratch']
  %s0 = inlined_call_operand.vmem [shape: f32[2,16,8], index: 0, kind: input, shape index: {}]
  %s1 = inlined_call_operand.vmem [shape: bf16[8,80], index: 1, kind: input, shape index: {}]
  %s2 = inlined_call_operand.vmem [shape: f32[8,3], index: 2, kind: input, shape index: {}]
  %s3 = inlined_call_operand.vmem [shape: bf16[4,24], index: 3, kind: input, shape index: {}]
  %s4 = inlined_call_operand.vmem [shape: f32[4,3], index: 4, kind: input, shape index: {}]
  %s5 = inlined_call_operand.hbm [shape: f32[2,4,128], index: 5, kind: output, shape index: {}]
  %s6 = sld [smem:[#allocation0]]
  $region30: #{decoder_forward.1} parent=0
    _
  %s8 = ssub.s32 1, %s6
  %s9 = scalar_select 0, %s8, %s6
  $region1: #{decoder_forward.1} parent=0
    #allocation2 [shape = 'u8[4096]{0}', space=vmem, size = 0x1000, scoped, tag = 'output window, operand 0, single buffered']
    #allocation3 [shape = 's32[1]{0}', space=sflag, size = 0x4, scoped, tag = 'scoped memory for decoder_forward.1']
    %10 = vsyncpa [#allocation3], 0
    // Predicated region
    $region2: #{decoder_forward.1} parent=1 // pred_check
      _
    $region3: #{decoder_forward.1} parent=1 // pred_check_branch
      %12 = sbr.rel (0) target = $region5
    $region4: #{decoder_forward.1} parent=1 // pred_region
      _
    $region5: #{decoder_forward.1} parent=1 // pred_fallthru
      _
    // Predicated region
    $region6: #{decoder_forward.1} parent=1 // pred_check
      _
    $region7: #{decoder_forward.1} parent=1 // pred_check_branch
      %14 = sbr.rel (0) target = $region9
    $region8: #{decoder_forward.1} parent=1 // pred_region
      _
    $region9: #{decoder_forward.1} parent=1 // pred_fallthru
      _
    // Predicated region
    $region10: #{decoder_forward.1} parent=1 // pred_check
      _
    $region11: #{decoder_forward.1} parent=1 // pred_check_branch
      %16 = sbr.rel (0) target = $region13
    $region12: #{decoder_forward.1} parent=1 // pred_region
      _
    $region13: #{decoder_forward.1} parent=1 // pred_fallthru
      _
    // Predicated region
    $region14: #{decoder_forward.1} parent=1 // pred_check
      _
    $region15: #{decoder_forward.1} parent=1 // pred_check_branch
      %18 = sbr.rel (0) target = $region17
    $region16: #{decoder_forward.1} parent=1 // pred_region
      _
    $region17: #{decoder_forward.1} parent=1 // pred_fallthru
      _
    // Predicated region
    $region18: #{decoder_forward.1} parent=1 // pred_check
      _
    $region19: #{decoder_forward.1} parent=1 // pred_check_branch
      %20 = sbr.rel (0) target = $region21
    $region20: #{decoder_forward.1} parent=1 // pred_region
      _
    $region21: #{decoder_forward.1} parent=1 // pred_fallthru
      _
    %v22 = vld [vmem:[%s0] sm:$0xff]
    %v23 = vld [vmem:[%s0 + $0x8] sm:$0xff]
    %v24 = vld [vmem:[%s0 + $0x10] sm:$0xff]
    %v25 = vld [vmem:[%s0 + $0x18] sm:$0xff]
    %vm26 = vcmask 64512
    %v27 = vsel %vm26, %v22, 0.0
    %v28 = vsel %vm26, %v23, 0.0
    %v29 = vsel %vm26, %v24, 0.0
    %v30 = vsel %vm26, %v25, 0.0
    %v31 = vld [vmem:[%s1] sm:$0xf]
    %v32 = vld [vmem:[%s2] sm:$0xff]
    %v33 = vpack.c.bf16 %v29, %v27
    %v34 = vpack.c.bf16 %v30, %v28
    %v37 = vunpack.c.l.b16 %v33
    %v38 = vunpack.c.h.b16 %v33
    %v39 = vunpack.c.l.b16 %v34
    %v40 = vunpack.c.h.b16 %v34
    %v41 = vpack.c.b16 %v39, %v37
    %v42 = vpack.c.b16 %v40, %v38
    %43 = vrot.lane.b32.xlu0 %v41, 1
    %v44 = vpop.permute.xlu0 %43
    %45 = vrot.lane.b32.xlu0 %v42, 1
    %v46 = vpop.permute.xlu0 %45
    %vm47 = vcmask 7168
    %v48 = vsel %vm47, %v44, %v46
    %vm50 = vcmask 7168
    %v53 = vsel %vm50, 0, %v44
    %55 = vrot.lane.b32.xlu0 %v41, 2
    %v56 = vpop.permute.xlu0 %55
    %57 = vrot.lane.b32.xlu0 %v42, 2
    %v58 = vpop.permute.xlu0 %57
    %vm59 = vcmask 15360
    %v60 = vsel %vm59, %v56, %v58
    %vm62 = vcmask 15360
    %v64 = vsel %vm62, 0, %v56
    %66 = vrot.lane.b32.xlu0 %v41, 3
    %v67 = vpop.permute.xlu0 %66
    %68 = vrot.lane.b32.xlu0 %v42, 3
    %v69 = vpop.permute.xlu0 %68
    %vm70 = vcmask 23552
    %v71 = vsel %vm70, %v67, %v69
    %vm73 = vcmask 23552
    %v75 = vsel %vm73, 0, %v67
    %77 = vrot.lane.b32.xlu0 %v41, 4
    %v78 = vpop.permute.xlu0 %77
    %79 = vrot.lane.b32.xlu0 %v42, 4
    %v80 = vpop.permute.xlu0 %79
    %vm81 = vcmask 31744
    %v82 = vsel %vm81, %v78, %v80
    %vm84 = vcmask 31744
    %v86 = vsel %vm84, 0, %v78
    %vm90 = vcmask 654336
    %v92 = vsel %vm90, %v31, 0
    %94 = vmatpush.bf16.msra.mxu0 0
    %95 = vmatpush.bf16.msra.mxu0 0
    %96 = vmatpush.bf16.msra.mxu0 0
    %97 = vmatpush.bf16.msra.mxu0 %v86
    %98 = vmatpush.bf16.msra.mxu0 %v75
    %99 = vmatpush.bf16.msra.mxu0 %v64
    %100 = vmatpush.bf16.msra.mxu0 %v53
    %101 = vmatpush.bf16.msra.mxu0 %v41
    %102 = vmatmul.bf16.gmra.mxu0 %v92
    %v103 = vpop.f32.mrf.mxu0
    %v104 = vadd.f32 0.0, %v103
    %v105 = vpop.f32.mrf.mxu0
    %106 = vdwg.mxu0
    %107 = vmatpush.bf16.msra.mxu0 0
    %108 = vmatpush.bf16.msra.mxu0 0
    %109 = vmatpush.bf16.msra.mxu0 0
    %110 = vmatpush.bf16.msra.mxu0 %v82
    %111 = vmatpush.bf16.msra.mxu0 %v71
    %112 = vmatpush.bf16.msra.mxu0 %v60
    %113 = vmatpush.bf16.msra.mxu0 %v48
    %114 = vmatpush.bf16.msra.mxu0 %v42
    %115 = vmatmul.bf16.gmra.mxu0 %v92
    %v116 = vpop.f32.mrf.mxu0
    %v117 = vadd.f32 0.0, %v116
    %v118 = vpop.f32.mrf.mxu0
    %119 = vdwg.mxu0
    %v120 = vadd.f32 %v104, %v117
    %121 = vadd.xlane.f32.xlu0 %v120
    %v122 = vpop.xlane.xlu0 %121
    %v123 = vmul.f32 %v104, %v104
    %v124 = vmul.f32 %v117, %v117
    %v125 = vadd.f32 %v123, %v124
    %126 = vadd.xlane.f32.xlu0 %v125
    %v127 = vpop.xlane.xlu0 %126
    %v128 = vrcp.pop 24.0
    %v129 = vmul.f32 24.0, %v128
    %v130 = vsub.f32 1.0, %v129
    %v131 = vmul.f32 %v128, %v130
    %v132 = vadd.f32 %v128, %v131
    %vm133 = vweird.f32 %v128
    %v134 = vsel %vm133, %v128, %v132
    %v135 = vmul.f32 %v122, %v134
    %v136 = vmul.f32 %v127, %v134
    %v137 = vmul.f32 %v135, %v135
    %v138 = vsub.f32 %v136, %v137
    %v139 = vadd.f32 %v138, 1e-05
    %v140 = vrsqrt.pop %v139
    %v141 = vmul.f32 %v140, %v139
    %v142 = vmul.f32 %v141, %v140
    %v143 = vmul.f32 0.5, %v142
    %v144 = vsub.f32 1.5, %v143
    %v145 = vmul.f32 %v140, %v144
    %vm146 = vweird.f32 %v139
    %vm147 = vweird.f32 %v140
    %vm148 = vmor %vm146, %vm147
    %v149 = vsel %vm148, %v140, %v145
    %v150 = vmul.f32 %v32, %v149
    %v151 = vmul.f32 %v135, %v150
    %153 = vrot.lane.b32.xlu0 %v151, 1
    %v154 = vpop.permute.xlu0 %153
    %v156 = vsub.f32 %v32, %v154
    %158 = vset.pattern.permute.xlu0 1
    %159 = vperm.xlu0 %158, %v150
    %v160 = vpop.permute.xlu0 %159
    %v162 = vmul.f32 %v104, %v160
    %v163 = vmul.f32 %v117, %v160
    %165 = vset.pattern.permute.xlu0 2
    %166 = vperm.xlu0 %165, %v156
    %v167 = vpop.permute.xlu0 %166
    %v169 = vadd.f32 %v162, %v167
    %v170 = vadd.f32 %v163, %v167
    %v171 = vmax.f32 %v169, 0.0
    %v172 = vmax.f32 %v170, 0.0
    %v173 = vlaneseq
    %v174 = vand.u32 %v173, 127
    %vm175 = vcmp.lt.s32.totalorder %v174, 12
    %v176 = vsel %vm175, 1, 0
    %v177 = vcvt.s32.f32 %v176
    %v178 = vperm.slane %v177, 0
    %v179 = vmul.f32 %v171, %v178
    %v180 = vmul.f32 %v172, %v178
    %v181 = vld [vmem:[%s3] sm:$0x3]
    %v182 = vld [vmem:[%s4] sm:$0xf]
    %v183 = vpack.c.bf16 %v180, %v179
    %v185 = vunpack.c.l.b16 %v183
    %v186 = vunpack.c.h.b16 %v183
    %v187 = vpack.c.b16 %v185, %v185
    %v188 = vpack.c.b16 %v186, %v186
    %189 = vrot.lane.b32.xlu0 %v187, 1
    %v190 = vpop.permute.xlu0 %189
    %191 = vrot.lane.b32.xlu0 %v188, 1
    %v192 = vpop.permute.xlu0 %191
    %v193 = vsel %vm47, %v190, %v192
    %v195 = vsel %vm50, 0, %v190
    %196 = vrot.lane.b32.xlu0 %v187, 2
    %v197 = vpop.permute.xlu0 %196
    %198 = vrot.lane.b32.xlu0 %v188, 2
    %v199 = vpop.permute.xlu0 %198
    %v200 = vsel %vm59, %v197, %v199
    %v202 = vsel %vm62, 0, %v197
    %v204 = vrot.slane %v195, 4
    %v205 = vrot.slane %v193, 4
    %vm206 = vcmask 1043456
    %v209 = vsel %vm206, %v187, %v204
    %v213 = vsel %vm206, %v188, %v205
    %216 = vset.pattern.permute.xlu0 0
    %217 = vperm.xlu0 %216, %v182
    %v218 = vpop.permute.xlu0 %217
    %vm220 = vcmask 195584
    %v222 = vsel %vm220, %v181, 0
    %v224 = vsel %vm206, %v202, 0
    %v227 = vsel %vm206, %v200, 0
    %229 = vmatpush.bf16.msra.mxu0 0
    %230 = vmatpush.bf16.msra.mxu0 0
    %231 = vmatpush.bf16.msra.mxu0 0
    %232 = vmatpush.bf16.msra.mxu0 0
    %233 = vmatpush.bf16.msra.mxu0 0
    %234 = vmatpush.bf16.msra.mxu0 0
    %235 = vmatpush.bf16.msra.mxu0 %v224
    %236 = vmatpush.bf16.msra.mxu0 %v209
    %237 = vmatmul.bf16.gmra.mxu0 %v222
    %v238 = vpop.f32.mrf.mxu0
    %v239 = vadd.f32 %v218, %v238
    %v240 = vpop.f32.mrf.mxu0
    %241 = vdwg.mxu0
    %242 = vmatpush.bf16.msra.mxu0 0
    %243 = vmatpush.bf16.msra.mxu0 0
    %244 = vmatpush.bf16.msra.mxu0 0
    %245 = vmatpush.bf16.msra.mxu0 0
    %246 = vmatpush.bf16.msra.mxu0 0
    %247 = vmatpush.bf16.msra.mxu0 0
    %248 = vmatpush.bf16.msra.mxu0 %v227
    %249 = vmatpush.bf16.msra.mxu0 %v213
    %250 = vmatmul.bf16.gmra.mxu0 %v222
    %v251 = vpop.f32.mrf.mxu0
    %v252 = vadd.f32 %v218, %v251
    %v253 = vpop.f32.mrf.mxu0
    %254 = vdwg.mxu0
    %255 = vst [vmem:[#allocation2] sm:$0xf] %v239
    %256 = vst [vmem:[#allocation2 + $0x4] sm:$0xf] %v252
    // Predicated region
    $region22: #{decoder_forward.1} parent=1 // pred_check
      _
    $region23: #{decoder_forward.1} parent=1 // pred_check_branch
      %258 = sbr.rel (0) target = $region25
    $region24: #{decoder_forward.1} parent=1 // pred_region
      %260 = vsyncadd [#allocation3], 0
      %s261 = sshll.u32 [#allocation2], 4
      %s262 = int_to_ptr.vmem [resolvable:$true] %s261
      %s263 = sshll.u32 %s5, 4
      %s264 = int_to_ptr.hbm [resolvable:$true] %s263
      %269 = dma.vmem_to_hbm [thread:$0]  %s262, 128, %s264, [#allocation3], 64, 64, 4
    $region25: #{decoder_forward.1} parent=1 // pred_fallthru
      _
    // Predicated region
    $region26: #{decoder_forward.1} parent=1 // pred_check
      _
    $region27: #{decoder_forward.1} parent=1 // pred_check_branch
      %271 = sbr.rel (0) target = $region29
    $region28: #{decoder_forward.1} parent=1 // pred_region
      %273 = dma.done [#allocation3], 128
    $region29: #{decoder_forward.1} parent=1 // pred_fallthru
      _
    %274 = vsyncpa [#allocation3], 1

</llo_original>
